<compile_context>
chip_gen: v7x
topology: tpu7x:2x2x1
jax: 0.10.0
libtpu: 0.0.40
codegen_flags: <defaults>
</compile_context>

<pallas_src>
import math

import jax
import jax.numpy as jnp
from jax import lax
from jax.experimental import pallas as pl
from jax.experimental.pallas import tpu as pltpu


def _round_up(x, m):
    return (x + m - 1) // m * m


def _cdiv(a, b):
    return -(-a // b)


# --------------------------------------------------------------------------------------
# Pallas kernel
# --------------------------------------------------------------------------------------
def _dsc_kernel(vals_ref, wgt_ref, wmat_ref, bias_ref, out_ref, blk_ref):
    """Fused bilinear corner weighting + single MXU contraction for one pixel tile.

    vals_ref: (C_in, J, Tp)      gathered corner pixel values, jj = corner*K*K + tap
    wgt_ref : (J, Tp)  float32   compact bilinear corner weights (pad rows are 0)
    wmat_ref: (C_out, C_in*J)    conv_main weights replicated over the 4 corners
    bias_ref: (C_out, 1) float32
    out_ref : (C_out, Tp)
    blk_ref : (C_in*J, Tp) f32   VMEM scratch for the weighted samples
    """
    c_in, j, _ = vals_ref.shape
    w = wgt_ref[...]                                    # (J, Tp), f32
    for ci in range(c_in):                              # static unroll, aligned slabs (J % 8 == 0)
        blk_ref[ci * j:(ci + 1) * j, :] = vals_ref[ci].astype(jnp.float32) * w
    blk = blk_ref[...].astype(wmat_ref.dtype)           # one pack of the full block for the MXU
    acc = jnp.dot(wmat_ref[...], blk, preferred_element_type=jnp.float32)
    out_ref[...] = (acc + bias_ref[...]).astype(out_ref.dtype)


# --------------------------------------------------------------------------------------
# Shared host-side sampling math (offset conv + snake accumulation + bilinear corners)
# --------------------------------------------------------------------------------------
def _snake_bilinear_corners(x, w_off, b_off, kernel_size, stride, padding):
    """Returns (cw, cxi, cyi, H_out, W_out); each of shape (B, H_out, W_out, K, K, 4)."""
    B, C_in, H, W = x.shape
    K = kernel_size

    offset = lax.conv_general_dilated(
        x, w_off, window_strides=(stride, stride),
        padding=[(padding, padding), (padding, padding)],
        dimension_numbers=("NCHW", "OIHW", "NCHW"))
    offset = offset + b_off[None, :, None, None]
    H_out, W_out = offset.shape[2], offset.shape[3]

    # "snake" offset accumulation -- exact semantics of the two in-place loops:
    #   x-offset(i, j) = cumsum_i of orig[:, i', j=0, c=0]
    #   y-offset(i, j) = cumsum_j of orig[:, i=0, j', c=1]
    off = jnp.transpose(offset, (0, 2, 3, 1)).reshape(B, H_out, W_out, K, K, 2)
    off_x = jnp.cumsum(off[:, :, :, :, 0, 0], axis=3)
    off_y = jnp.cumsum(off[:, :, :, 0, :, 1], axis=3)
    off_x = jnp.broadcast_to(off_x[:, :, :, :, None], (B, H_out, W_out, K, K))
    off_y = jnp.broadcast_to(off_y[:, :, :, None, :], (B, H_out, W_out, K, K))

    # sampling grid (normalized) + grid_sample(align_corners=False, padding_mode='zeros')
    y_range = jnp.linspace(-1.0, 1.0, H_out, dtype=x.dtype)
    x_range = jnp.linspace(-1.0, 1.0, W_out, dtype=x.dtype)
    gx = x_range[None, None, :, None, None] + off_x          # (B, H, W, K, K)
    gy = y_range[None, :, None, None, None] + off_y

    ix = ((gx + 1.0) * W - 1.0) * 0.5
    iy = ((gy + 1.0) * H - 1.0) * 0.5
    x0 = jnp.floor(ix)
    y0 = jnp.floor(iy)
    x1 = x0 + 1.0
    y1 = y0 + 1.0
    wx1 = ix - x0
    wx0 = 1.0 - wx1
    wy1 = iy - y0
    wy0 = 1.0 - wy1
    # corners ordered (y0,x0), (y0,x1), (y1,x0), (y1,x1)
    cx = jnp.stack([x0, x1, x0, x1], axis=-1)
    cy = jnp.stack([y0, y0, y1, y1], axis=-1)
    cw = jnp.stack([wy0 * wx0, wy0 * wx1, wy1 * wx0, wy1 * wx1], axis=-1)
    valid = ((cx >= 0) & (cx <= W - 1) & (cy >= 0) & (cy <= H - 1)).astype(x.dtype)
    cw = cw * valid
    cxi = jnp.clip(cx, 0, W - 1).astype(jnp.int32)
    cyi = jnp.clip(cy, 0, H - 1).astype(jnp.int32)
    return cw, cxi, cyi, H_out, W_out


# --------------------------------------------------------------------------------------
# Forward pass (Pallas)
# --------------------------------------------------------------------------------------
def dynamic_snake_conv(x, w_off, b_off, w_main, b_main,
                       kernel_size=3, stride=1, padding=1,
                       compute_dtype=jnp.bfloat16, tile_p=None):
    B, C_in, H, W = x.shape
    K = kernel_size
    KK = K * K
    C_out = w_main.shape[0]
    compute_dtype = jnp.dtype(compute_dtype)

    cw, cxi, cyi, H_out, W_out = _snake_bilinear_corners(
        x, w_off, b_off, kernel_size, stride, padding)
    P = H_out * W_out
    J = _round_up(4 * KK, 8)          # corner*tap axis padded to a sublane multiple
    M = C_in * J                      # MXU contraction dim

    # ---- per-pixel corner indices / weights in (B, jj = corner*KK + tap, P) layout ----
    pix = (cyi * W + cxi).reshape(B, P, KK, 4)
    idx = jnp.transpose(pix, (0, 3, 2, 1)).reshape(B, 4 * KK, P)            # int32, small
    wgt = jnp.transpose(cw.reshape(B, P, KK, 4), (0, 3, 2, 1)).reshape(B, 4 * KK, P)
    wgt = wgt.astype(jnp.float32)     # keep bilinear weights in f32 for accuracy

    # ---- tile / VMEM sizing (padding-aware, per-generation via get_tpu_info) ----------
    vi = compute_dtype.itemsize
    oi = jnp.dtype(x.dtype).itemsize
    bytes_per_col = (2 * M * vi           # vals stream, double-buffered
                     + 2 * J * 4          # wgt stream (f32), double-buffered
                     + 2 * C_out * oi     # output tile, double-buffered
                     + M * 4              # blk VMEM scratch (f32)
                     + M * (4 + vi)       # in-kernel temporaries
                     + C_out * 4)         # f32 accumulator
    fixed_bytes = 2 * C_out * M * vi + 2 * C_out * 128 * 4     # wmat + (lane-padded) bias
    try:
        vmem_cap = int(pltpu.get_tpu_info().vmem_capacity_bytes)
    except Exception:                                            # pragma: no cover
        vmem_cap = 64 * 1024 * 1024
    budget = min(int(0.45 * vmem_cap), 64 * 1024 * 1024) - fixed_bytes

    P128 = _round_up(P, 128)
    if tile_p is None:
        tile_cap = max(128, min(2048, budget // bytes_per_col // 128 * 128))
        tile_cap = min(tile_cap, P128)
        n_tiles = _cdiv(P128, tile_cap)
        if B == 1 and n_tiles == 1 and P128 >= 256:
            n_tiles = 2                        # keep both v7x TensorCores busy
        tile_p = _round_up(_cdiv(P128, n_tiles), 128)
    else:
        assert tile_p % 128 == 0, "tile_p must be a multiple of 128 (lane width)"
        n_tiles = _cdiv(P128, tile_p)
    P_pad = tile_p * n_tiles

    est_vmem = fixed_bytes + bytes_per_col * tile_p
    vmem_limit = int(min(max(2 * est_vmem, 32 * 1024 * 1024), int(0.75 * vmem_cap)))

    # ---- pad indices / weights in the *small* domain, then gather straight into the
    #      kernel layout (one HBM write of the sampled tensor, already in compute dtype)
    idx = jnp.pad(idx, ((0, 0), (0, J - 4 * KK), (0, P_pad - P)))
    wgt = jnp.pad(wgt, ((0, 0), (0, J - 4 * KK), (0, P_pad - P)))

    x_flat = x.reshape(B, C_in, H * W).astype(compute_dtype)
    g = jax.vmap(lambda xf, ii: xf[:, ii])(x_flat, idx.reshape(B, J * P_pad))
    vals = g.reshape(B, C_in, J, P_pad)                                      # (B,C_in,J,P_pad)

    # conv_main weight replicated over the 4 bilinear corners, zero on the J pad columns
    wmat = jnp.broadcast_to(w_main.reshape(C_out, C_in, 1, KK), (C_out, C_in, 4, KK))
    wmat = wmat.reshape(C_out, C_in, 4 * KK)
    wmat = jnp.pad(wmat, ((0, 0), (0, 0), (0, J - 4 * KK)))
    wmat = wmat.reshape(C_out, M).astype(compute_dtype)
    bias = b_main.reshape(C_out, 1).astype(jnp.float32)

    flops = 2 * B * P_pad * C_out * M + 2 * B * P_pad * M
    bytes_accessed = (vals.size * vals.dtype.itemsize
                      + wgt.size * wgt.dtype.itemsize
                      + wmat.size * wmat.dtype.itemsize
                      + bias.size * 4
                      + B * C_out * P_pad * oi)
    cost = pl.CostEstimate(flops=int(flops), transcendentals=0,
                           bytes_accessed=int(bytes_accessed))

    grid = (B, n_tiles)
    out = pl.pallas_call(
        _dsc_kernel,
        out_shape=jax.ShapeDtypeStruct((B, C_out, P_pad), x.dtype),
        grid_spec=pltpu.PrefetchScalarGridSpec(
            num_scalar_prefetch=0,
            grid=grid,
            in_specs=[
                pl.BlockSpec((None, C_in, J, tile_p), lambda b, t: (b, 0, 0, t)),
                pl.BlockSpec((None, J, tile_p), lambda b, t: (b, 0, t)),
                pl.BlockSpec((C_out, M), lambda b, t: (0, 0)),
                pl.BlockSpec((C_out, 1), lambda b, t: (0, 0)),
            ],
            out_specs=pl.BlockSpec((None, C_out, tile_p), lambda b, t: (b, 0, t)),
            scratch_shapes=[pltpu.VMEM((M, tile_p), jnp.float32)],
        ),
        compiler_params=pltpu.CompilerParams(
            dimension_semantics=("parallel", "parallel"),
            vmem_limit_bytes=vmem_limit),
        cost_estimate=cost,
    )(vals, wgt, wmat, bias)

    # (B, C_out, P) -> NCHW with no layout transpose
    return out[:, :, :P].reshape(B, C_out, H_out, W_out)


# --------------------------------------------------------------------------------------
# Dense pure-JAX reference (same sampling math, einsum contraction) for the self-check
# --------------------------------------------------------------------------------------
def dynamic_snake_conv_reference(x, w_off, b_off, w_main, b_main,
                                 kernel_size=3, stride=1, padding=1):
    B, C_in, H, W = x.shape
    K = kernel_size
    KK = K * K
    C_out = w_main.shape[0]
    cw, cxi, cyi, H_out, W_out = _snake_bilinear_corners(
        x, w_off, b_off, kernel_size, stride, padding)
    x_flat = x.reshape(B, C_in, H * W)
    idx = (cyi * W + cxi).reshape(B, -1)
    g = jax.vmap(lambda xf, ii: xf[:, ii])(x_flat, idx)            # (B, C_in, P*KK*4)
    g = g.reshape(B, C_in, H_out, W_out, KK, 4)
    samp = jnp.einsum('bchwka,bhwka->bchwk', g,
                      cw.reshape(B, H_out, W_out, KK, 4),
                      precision=lax.Precision.HIGHEST)
    out = jnp.einsum('bchwk,ock->bohw', samp, w_main.reshape(C_out, C_in, KK),
                     precision=lax.Precision.HIGHEST)
    return out + b_main[None, :, None, None]


if __name__ == "__main__":
    B, C_in, C_out, H, W, K = 2, 4, 8, 16, 16, 3

    key = jax.random.PRNGKey(0)
    k1, k2, k3, k4 = jax.random.split(key, 4)

    # Module parameters. The reference zero-inits conv_offset; use small deterministic
    # values instead so the dynamic-offset path is actually exercised.
    w_off = 0.01 * jax.random.normal(k1, (2 * K * K, C_in, K, K), jnp.float32)
    b_off = jnp.zeros((2 * K * K,), jnp.float32)
    fan_out = C_out * K * K
    w_main = jax.random.normal(k2, (C_out, C_in, K, K), jnp.float32) * math.sqrt(2.0 / fan_out)
    b_main = 0.1 * jax.random.normal(k4, (C_out,), jnp.float32)

    x = jax.random.normal(k3, (B, C_in, H, W), jnp.float32)

    y_ref = dynamic_snake_conv_reference(x, w_off, b_off, w_main, b_main,
                                         kernel_size=K, stride=1, padding=1)

    # Exact f32 streaming path -- tight tolerance.
    run_f32 = jax.jit(lambda *a: dynamic_snake_conv(*a, kernel_size=K, stride=1, padding=1,
                                                    compute_dtype=jnp.float32))
    y32 = run_f32(x, w_off, b_off, w_main, b_main)
    jax.block_until_ready(y32)
    assert y32.shape == (B, C_out, H, W), y32.shape
    err32 = float(jnp.max(jnp.abs(y32 - y_ref)))
    assert err32 < 1e-3, f"f32 path: max abs error vs dense reference: {err32}"

    # Default bf16 streaming path (halves HBM traffic of the dominant operand).
    run_bf16 = jax.jit(lambda *a: dynamic_snake_conv(*a, kernel_size=K, stride=1, padding=1))
    y16 = run_bf16(x, w_off, b_off, w_main, b_main)
    jax.block_until_ready(y16)
    assert y16.shape == (B, C_out, H, W), y16.shape
    err16 = float(jnp.max(jnp.abs(y16 - y_ref)))
    assert err16 < 5e-2, f"bf16 path: max abs error vs dense reference: {err16}"

    print("KERNEL_OK")
</pallas_src>

<mosaic_0001>
module attributes {stable_mosaic.version = 11 : i64} {
  func.func @_dsc_kernel(%arg0: i32, %arg1: i32, %arg2: memref<1x4x40x256xf32, #tpu.memory_space<vmem>>, %arg3: memref<1x40x256xf32, #tpu.memory_space<vmem>>, %arg4: memref<8x160xf32, #tpu.memory_space<vmem>>, %arg5: memref<8x1xf32, #tpu.memory_space<vmem>>, %arg6: memref<1x8x256xf32, #tpu.memory_space<vmem>>, %arg7: memref<160x256xf32, #tpu.memory_space<vmem>>) attributes {dimension_semantics = [#tpu.dimension_semantics<parallel>, #tpu.dimension_semantics<parallel>], iteration_bounds = array<i64: 2, 1>, scalar_prefetch = 0 : i64, scratch_operands = 1 : i64, tpu.core_type = #tpu.core_type<tc>, window_params = [{transform_indices = @transform_0, window_bounds = array<i64: 1, 4, 40, 256>}, {transform_indices = @transform_1, window_bounds = array<i64: 1, 40, 256>}, {pipeline_mode = #tpu.pipeline_mode<synchronous>, transform_indices = @transform_2, window_bounds = array<i64: 8, 160>}, {pipeline_mode = #tpu.pipeline_mode<synchronous>, transform_indices = @transform_3, window_bounds = array<i64: 8, 1>}, {transform_indices = @transform_4, window_bounds = array<i64: 1, 8, 256>}]} {
    %c0 = arith.constant 0 : index
    %c0_0 = arith.constant 0 : index
    %c0_1 = arith.constant 0 : index
    %0 = vector.load %arg3[%c0, %c0_0, %c0_1] : memref<1x40x256xf32, #tpu.memory_space<vmem>>, vector<1x40x256xf32>
    %1 = vector.shape_cast %0 : vector<1x40x256xf32> to vector<40x256xf32>
    %c0_2 = arith.constant 0 : index
    %c0_3 = arith.constant 0 : index
    %c0_4 = arith.constant 0 : index
    %c0_5 = arith.constant 0 : index
    %2 = vector.load %arg2[%c0_2, %c0_3, %c0_4, %c0_5] : memref<1x4x40x256xf32, #tpu.memory_space<vmem>>, vector<1x1x40x256xf32>
    %3 = vector.shape_cast %2 : vector<1x1x40x256xf32> to vector<40x256xf32>
    %4 = arith.mulf %3, %1 : vector<40x256xf32>
    %c0_6 = arith.constant 0 : index
    %c0_7 = arith.constant 0 : index
    %5 = vector.load %arg7[%c0_6, %c0_7] : memref<160x256xf32, #tpu.memory_space<vmem>>, vector<40x256xf32>
    tpu.vector_store %arg7[%c0_6, %c0_7], %4 {strides = array<i32>} : memref<160x256xf32, #tpu.memory_space<vmem>>, vector<40x256xf32>,
    %c0_8 = arith.constant 0 : index
    %c1 = arith.constant 1 : index
    %c0_9 = arith.constant 0 : index
    %c0_10 = arith.constant 0 : index
    %6 = vector.load %arg2[%c0_8, %c1, %c0_9, %c0_10] : memref<1x4x40x256xf32, #tpu.memory_space<vmem>>, vector<1x1x40x256xf32>
    %7 = vector.shape_cast %6 : vector<1x1x40x256xf32> to vector<40x256xf32>
    %8 = arith.mulf %7, %1 : vector<40x256xf32>
    %c40 = arith.constant 40 : index
    %c0_11 = arith.constant 0 : index
    %9 = vector.load %arg7[%c40, %c0_11] : memref<160x256xf32, #tpu.memory_space<vmem>>, vector<40x256xf32>
    tpu.vector_store %arg7[%c40, %c0_11], %8 {strides = array<i32>} : memref<160x256xf32, #tpu.memory_space<vmem>>, vector<40x256xf32>,
    %c0_12 = arith.constant 0 : index
    %c2 = arith.constant 2 : index
    %c0_13 = arith.constant 0 : index
    %c0_14 = arith.constant 0 : index
    %10 = vector.load %arg2[%c0_12, %c2, %c0_13, %c0_14] : memref<1x4x40x256xf32, #tpu.memory_space<vmem>>, vector<1x1x40x256xf32>
    %11 = vector.shape_cast %10 : vector<1x1x40x256xf32> to vector<40x256xf32>
    %12 = arith.mulf %11, %1 : vector<40x256xf32>
    %c80 = arith.constant 80 : index
    %c0_15 = arith.constant 0 : index
    %13 = vector.load %arg7[%c80, %c0_15] : memref<160x256xf32, #tpu.memory_space<vmem>>, vector<40x256xf32>
    tpu.vector_store %arg7[%c80, %c0_15], %12 {strides = array<i32>} : memref<160x256xf32, #tpu.memory_space<vmem>>, vector<40x256xf32>,
    %c0_16 = arith.constant 0 : index
    %c3 = arith.constant 3 : index
    %c0_17 = arith.constant 0 : index
    %c0_18 = arith.constant 0 : index
    %14 = vector.load %arg2[%c0_16, %c3, %c0_17, %c0_18] : memref<1x4x40x256xf32, #tpu.memory_space<vmem>>, vector<1x1x40x256xf32>
    %15 = vector.shape_cast %14 : vector<1x1x40x256xf32> to vector<40x256xf32>
    %16 = arith.mulf %15, %1 : vector<40x256xf32>
    %c120 = arith.constant 120 : index
    %c0_19 = arith.constant 0 : index
    %17 = vector.load %arg7[%c120, %c0_19] : memref<160x256xf32, #tpu.memory_space<vmem>>, vector<40x256xf32>
    tpu.vector_store %arg7[%c120, %c0_19], %16 {strides = array<i32>} : memref<160x256xf32, #tpu.memory_space<vmem>>, vector<40x256xf32>,
    %c0_20 = arith.constant 0 : index
    %c0_21 = arith.constant 0 : index
    %18 = vector.load %arg7[%c0_20, %c0_21] : memref<160x256xf32, #tpu.memory_space<vmem>>, vector<160x256xf32>
    %c0_22 = arith.constant 0 : index
    %c0_23 = arith.constant 0 : index
    %19 = vector.load %arg4[%c0_22, %c0_23] : memref<8x160xf32, #tpu.memory_space<vmem>>, vector<8x160xf32>
    %cst = arith.constant dense<0.000000e+00> : vector<8x256xf32>
    %20 = tpu.matmul %19, %18, %cst {dimension_numbers = #tpu.dot_dimension_numbers<[1], [0], [0], [1], [0, 0, 1, 1], [], []>} : vector<8x160xf32>, vector<160x256xf32>, vector<8x256xf32> -> vector<8x256xf32>
    %c0_24 = arith.constant 0 : index
    %c0_25 = arith.constant 0 : index
    %21 = vector.load %arg5[%c0_24, %c0_25] : memref<8x1xf32, #tpu.memory_space<vmem>>, vector<8x1xf32>
    %22 = vector.broadcast %21 : vector<8x1xf32> to vector<8x256xf32>
    %23 = arith.addf %20, %22 : vector<8x256xf32>
    %c0_26 = arith.constant 0 : index
    %c0_27 = arith.constant 0 : index
    %c0_28 = arith.constant 0 : index
    %24 = vector.load %arg6[%c0_26, %c0_27, %c0_28] : memref<1x8x256xf32, #tpu.memory_space<vmem>>, vector<1x8x256xf32>
    %25 = vector.shape_cast %24 : vector<1x8x256xf32> to vector<8x256xf32>
    %26 = vector.shape_cast %23 : vector<8x256xf32> to vector<1x8x256xf32>
    tpu.vector_store %arg6[%c0_26, %c0_27, %c0_28], %26 {strides = array<i32>} : memref<1x8x256xf32, #tpu.memory_space<vmem>>, vector<1x8x256xf32>,
    return
  }
  func.func @transform_0(%arg0: i32, %arg1: i32) -> (i32, i32, i32, i32) {
    %c0_i32 = arith.constant 0 : i32
    %c0_i32_0 = arith.constant 0 : i32
    %c0_i32_1 = arith.constant 0 : i32
    return %arg0, %c0_i32, %c0_i32_0, %arg1 : i32, i32, i32, i32
  }
  func.func @transform_1(%arg0: i32, %arg1: i32) -> (i32, i32, i32) {
    %c0_i32 = arith.constant 0 : i32
    %c0_i32_0 = arith.constant 0 : i32
    return %arg0, %c0_i32, %arg1 : i32, i32, i32
  }
  func.func @transform_2(%arg0: i32, %arg1: i32) -> (i32, i32) {
    %c0_i32 = arith.constant 0 : i32
    %c0_i32_0 = arith.constant 0 : i32
    %c0_i32_1 = arith.constant 0 : i32
    return %c0_i32, %c0_i32_0 : i32, i32
  }
  func.func @transform_3(%arg0: i32, %arg1: i32) -> (i32, i32) {
    %c0_i32 = arith.constant 0 : i32
    %c0_i32_0 = arith.constant 0 : i32
    %c0_i32_1 = arith.constant 0 : i32
    return %c0_i32, %c0_i32_0 : i32, i32
  }
  func.func @transform_4(%arg0: i32, %arg1: i32) -> (i32, i32, i32) {
    %c0_i32 = arith.constant 0 : i32
    %c0_i32_0 = arith.constant 0 : i32
    return %arg0, %c0_i32, %arg1 : i32, i32, i32
  }
}

</mosaic_0001>

<llo_original>
// kernel: _lambda_.1
$region0: #{_lambda_.1}
  #allocation0 [shape = 'u32[]', space=smem, size = 0x4, offset = 0x4, fixed_abs, tag = 'smem constant byte address 0x4 - core index']
  #allocation1 [shape = 'u32[144,128]{1,0:T(1,128)}', space=vmem, size = 0x12000, scoped, tag = 'internal scratch']
  #allocation2 [shape = 'f32[160,256]{1,0:T(8,128)}', space=vmem, size = 0x28000, scoped, tag = 'scratch operand']
  %s0 = inlined_call_operand.vmem [shape: f32[2,4,40,256], index: 0, kind: input, shape index: {}]
  %s1 = inlined_call_operand.vmem [shape: f32[2,40,256], index: 1, kind: input, shape index: {}]
  %s2 = inlined_call_operand.vmem [shape: f32[8,160], index: 2, kind: input, shape index: {}]
  %s3 = inlined_call_operand.vmem [shape: f32[8,1], index: 3, kind: input, shape index: {}]
  %s4 = inlined_call_operand.vmem [shape: f32[2,8,256], index: 4, kind: output, shape index: {}]
  %s5 = sld [smem:[#allocation0]]
  $region49: #{_lambda_.1} parent=0
    _
  %s7 = ssub.s32 1, %s5
  %s8 = scalar_select 0, %s7, %s5
  loop: start=0, step=1, limit=4
  $region2: #{_lambda_.1} parent=0 // loop_pre_header
    _
  $region3: #{_lambda_.1} parent=0 // loop_header
    %s10 = sphi 0, %s14
    %p11 = scmp.ge.s32.totalorder %s10, 4
    %s17 = sphi 0, %s29
    %s18 = sphi 0, %s25
    %s19 = sphi 0, %s17
    %s20 = sphi 0, %s18
    %s21 = sphi 0, %s19
    %s22 = sphi 0, %s20
    %s34 = sphi 0, %s36
    %s37 = sphi 0, %s34
    %s38 = sphi 0, %s37
    %s54 = sphi 0, %s38
    %s62 = sphi 0, %s64
    %s65 = sphi 0, %s62
    %s66 = sphi 0, %s65
    %s82 = sphi 0, %s66
    %s86 = sphi 0, %s86
    %s88 = sphi 0, %s86
    %s89 = sphi 0, %s88
    %s103 = sphi 0, %s89
    %s107 = sphi 0, %s107
    %s109 = sphi 0, %s107
    %s110 = sphi 0, %s109
    %s124 = sphi 0, %s110
    %s132 = sphi 0, %s134
    %s135 = sphi 0, %s132
    %s136 = sphi 0, %s135
    %s152 = sphi 0, %s136
  $region4: #{_lambda_.1} parent=0 // loop_header_branch
    %13 = sbr.rel (%p11) target = $region8
  $region5: #{_lambda_.1} parent=0 // loop_body
    %s15 = ssub.s32 %s10, 1
    %s16 = ssub.s32 %s10, 2
    %s23 = sadd.s32 1, %s18
    %p24 = scmp.ge.s32.totalorder %s23, 1
    %s25 = scalar_select %p24, 0, %s23
    %s26 = sadd.s32 1, %s17
    %s27 = scalar_select %p24, %s26, %s17
    %p28 = scmp.ge.s32.totalorder %s27, 2
    %s29 = scalar_select %p28, 0, %s27
    %s30 = ssub.s32 %s17, %s29
    %s31 = ssub.s32 %s18, %s25
    %s32 = sor.u32 %s30, %s31
    %p33 = scmp.eq.s32.totalorder %s32, 0
    %s35 = sadd.s32 %s34, 1
    %s36 = scalar_select %p33, %s34, %s35
    %p39 = pneg %p33
    %p40 = scmp.eq.s32.totalorder %s10, 1
    %p41 = por %p39, %p40
    %p42 = scmp.ne.s32.totalorder %s34, %s37
    %p43 = scmp.eq.s32.totalorder %s10, 0
    %p44 = por %p42, %p43
    %p45 = scmp.ne.s32.totalorder %s34, %s37
    %p46 = scmp.eq.s32.totalorder %s15, 1
    %p47 = por %p45, %p46
    %p48 = scmp.ne.s32.totalorder %s37, %s38
    %p49 = scmp.eq.s32.totalorder %s15, 0
    %p50 = por %p48, %p49
    %p51 = scmp.ne.s32.totalorder %s37, %s38
    %p52 = scmp.eq.s32.totalorder %s16, 1
    %p53 = por %p51, %p52
    %p55 = scmp.ne.s32.totalorder %s38, %s54
    %p56 = scmp.eq.s32.totalorder %s16, 0
    %p57 = por %p55, %p56
    %s58 = ssub.s32 %s17, %s29
    %s59 = ssub.s32 %s18, %s25
    %s60 = sor.u32 %s58, %s59
    %p61 = scmp.eq.s32.totalorder %s60, 0
    %s63 = sadd.s32 %s62, 1
    %s64 = scalar_select %p61, %s62, %s63
    %p67 = pneg %p61
    %p68 = scmp.eq.s32.totalorder %s10, 1
    %p69 = por %p67, %p68
    %p70 = scmp.ne.s32.totalorder %s62, %s65
    %p71 = scmp.eq.s32.totalorder %s10, 0
    %p72 = por %p70, %p71
    %p73 = scmp.ne.s32.totalorder %s62, %s65
    %p74 = scmp.eq.s32.totalorder %s15, 1
    %p75 = por %p73, %p74
    %p76 = scmp.ne.s32.totalorder %s65, %s66
    %p77 = scmp.eq.s32.totalorder %s15, 0
    %p78 = por %p76, %p77
    %p79 = scmp.ne.s32.totalorder %s65, %s66
    %p80 = scmp.eq.s32.totalorder %s16, 1
    %p81 = por %p79, %p80
    %p83 = scmp.ne.s32.totalorder %s66, %s82
    %p84 = scmp.eq.s32.totalorder %s16, 0
    %p85 = por %p83, %p84
    %s87 = sadd.s32 %s86, 1
    %p90 = scmp.eq.s32.totalorder %s10, 1
    %p91 = scmp.ne.s32.totalorder %s86, %s88
    %p92 = scmp.eq.s32.totalorder %s10, 0
    %p93 = por %p91, %p92
    %p94 = scmp.ne.s32.totalorder %s86, %s88
    %p95 = scmp.eq.s32.totalorder %s15, 1
    %p96 = por %p94, %p95
    %p97 = scmp.ne.s32.totalorder %s88, %s89
    %p98 = scmp.eq.s32.totalorder %s15, 0
    %p99 = por %p97, %p98
    %p100 = scmp.ne.s32.totalorder %s88, %s89
    %p101 = scmp.eq.s32.totalorder %s16, 1
    %p102 = por %p100, %p101
    %p104 = scmp.ne.s32.totalorder %s89, %s103
    %p105 = scmp.eq.s32.totalorder %s16, 0
    %p106 = por %p104, %p105
    %s108 = sadd.s32 %s107, 1
    %p111 = scmp.eq.s32.totalorder %s10, 1
    %p112 = scmp.ne.s32.totalorder %s107, %s109
    %p113 = scmp.eq.s32.totalorder %s10, 0
    %p114 = por %p112, %p113
    %p115 = scmp.ne.s32.totalorder %s107, %s109
    %p116 = scmp.eq.s32.totalorder %s15, 1
    %p117 = por %p115, %p116
    %p118 = scmp.ne.s32.totalorder %s109, %s110
    %p119 = scmp.eq.s32.totalorder %s15, 0
    %p120 = por %p118, %p119
    %p121 = scmp.ne.s32.totalorder %s109, %s110
    %p122 = scmp.eq.s32.totalorder %s16, 1
    %p123 = por %p121, %p122
    %p125 = scmp.ne.s32.totalorder %s110, %s124
    %p126 = scmp.eq.s32.totalorder %s16, 0
    %p127 = por %p125, %p126
    %s128 = ssub.s32 %s17, %s29
    %s129 = ssub.s32 %s18, %s25
    %s130 = sor.u32 %s128, %s129
    %p131 = scmp.eq.s32.totalorder %s130, 0
    %s133 = sadd.s32 %s132, 1
    %s134 = scalar_select %p131, %s132, %s133
    %p137 = pneg %p131
    %p138 = scmp.eq.s32.totalorder %s10, 1
    %p139 = por %p137, %p138
    %p140 = scmp.ne.s32.totalorder %s132, %s135
    %p141 = scmp.eq.s32.totalorder %s10, 0
    %p142 = por %p140, %p141
    %p143 = scmp.ne.s32.totalorder %s132, %s135
    %p144 = scmp.eq.s32.totalorder %s15, 1
    %p145 = por %p143, %p144
    %p146 = scmp.ne.s32.totalorder %s135, %s136
    %p147 = scmp.eq.s32.totalorder %s15, 0
    %p148 = por %p146, %p147
    %p149 = scmp.ne.s32.totalorder %s135, %s136
    %p150 = scmp.eq.s32.totalorder %s16, 1
    %p151 = por %p149, %p150
    %p153 = scmp.ne.s32.totalorder %s136, %s152
    %p154 = scmp.eq.s32.totalorder %s16, 0
    %p155 = por %p153, %p154
    %p156 = scmp.le.s32.totalorder 1, %s10
    %p157 = scmp.lt.s32.totalorder %s10, 3
    %p158 = pnand %p156, %p157
    %p159 = pneg %p158
    // Predicated region
    $region9: #{_lambda_.1} parent=5 // pred_check
      _
    $region10: #{_lambda_.1} parent=5 // pred_check_branch
      %161 = sbr.rel (%p158) target = $region12
    $region11: #{_lambda_.1} parent=5 // pred_region
      %s162 = ssub.s32 %s10, 1
      // Predicated region
      $region13: #{_lambda_.1} parent=11 // pred_check
        %p163 = pneg %p99
      $region14: #{_lambda_.1} parent=11 // pred_check_branch
        %165 = sbr.rel (%p163) target = $region16
      $region15: #{_lambda_.1} parent=11 // pred_region
        _
      $region16: #{_lambda_.1} parent=11 // pred_fallthru
        _
      // Predicated region
      $region17: #{_lambda_.1} parent=11 // pred_check
        %p166 = pneg %p120
      $region18: #{_lambda_.1} parent=11 // pred_check_branch
        %168 = sbr.rel (%p166) target = $region20
      $region19: #{_lambda_.1} parent=11 // pred_region
        _
      $region20: #{_lambda_.1} parent=11 // pred_fallthru
        _
    $region12: #{_lambda_.1} parent=5 // pred_fallthru
      _
    %p169 = scmp.lt.s32.totalorder %s10, 2
    // Predicated region
    $region21: #{_lambda_.1} parent=5 // pred_check
      %p170 = pneg %p169
    $region22: #{_lambda_.1} parent=5 // pred_check_branch
      %172 = sbr.rel (%p170) target = $region24
    $region23: #{_lambda_.1} parent=5 // pred_region
      // Predicated region
      $region25: #{_lambda_.1} parent=23 // pred_check
        %p173 = pneg %p44
      $region26: #{_lambda_.1} parent=23 // pred_check_branch
        %175 = sbr.rel (%p173) target = $region28
      $region27: #{_lambda_.1} parent=23 // pred_region
        %s176 = smul.u32 2, %s18
        %p177 = scmp.lt.s32.totalorder %s17, 1
        %s178 = scalar_select %p177, %s17, 1
        %p179 = scmp.lt.s32.totalorder %s176, 1
        %s180 = scalar_select %p179, %s176, 1
        %s181 = smul.addr %s178, 40
        %s182 = sadd.s32 %s180, %s181
        %s183 = smul.addr %s182, 8
        %s184 = scalar_lea.vmem %s0, %s183
        %s185 = smul.u32 2, %s18
      $region28: #{_lambda_.1} parent=23 // pred_fallthru
        _
      // Predicated region
      $region29: #{_lambda_.1} parent=23 // pred_check
        %p186 = pneg %p72
      $region30: #{_lambda_.1} parent=23 // pred_check_branch
        %188 = sbr.rel (%p186) target = $region32
      $region31: #{_lambda_.1} parent=23 // pred_region
        %s189 = smul.u32 2, %s18
        %p190 = scmp.lt.s32.totalorder %s17, 1
        %s191 = scalar_select %p190, %s17, 1
        %p192 = scmp.lt.s32.totalorder %s189, 1
        %s193 = scalar_select %p192, %s189, 1
        %s194 = smul.addr %s191, 10
        %s195 = sadd.s32 %s193, %s194
        %s196 = smul.addr %s195, 8
        %s197 = scalar_lea.vmem %s1, %s196
        %s198 = smul.u32 2, %s18
      $region32: #{_lambda_.1} parent=23 // pred_fallthru
        _
    $region24: #{_lambda_.1} parent=5 // pred_fallthru
      _
    %p199 = scmp.le.s32.totalorder 1, %s10
    %p200 = scmp.lt.s32.totalorder %s10, 3
    %p201 = pnand %p199, %p200
    %p202 = pneg %p201
    // Predicated region
    $region33: #{_lambda_.1} parent=5 // pred_check
      _
    $region34: #{_lambda_.1} parent=5 // pred_check_branch
      %204 = sbr.rel (%p201) target = $region36
    $region35: #{_lambda_.1} parent=5 // pred_region
      %s205 = ssub.s32 %s10, 1
      %s206 = smul.u32 2, %s20
      %p207 = scmp.lt.s32.totalorder %s19, 1
      %s208 = scalar_select %p207, %s19, 1
      %p209 = scmp.lt.s32.totalorder %s206, 1
      %s210 = scalar_select %p209, %s206, 1
      %s211 = smul.addr %s208, 40
      %s212 = sadd.s32 %s210, %s211
      %s213 = smul.addr %s212, 8
      %s214 = scalar_lea.vmem %s0, %s213
      %p215 = pneg %p50
      %p216 = pneg %p47
      %s217 = smul.u32 2, %s20
      %p218 = scmp.lt.s32.totalorder %s19, 1
      %s219 = scalar_select %p218, %s19, 1
      %p220 = scmp.lt.s32.totalorder %s217, 1
      %s221 = scalar_select %p220, %s217, 1
      %s222 = smul.addr %s219, 10
      %s223 = sadd.s32 %s221, %s222
      %s224 = smul.addr %s223, 8
      %s225 = scalar_lea.vmem %s1, %s224
      %p226 = pneg %p78
      %p227 = pneg %p75
      %p228 = pneg %p99
      %p229 = pneg %p96
      %p230 = pneg %p120
      %p231 = pneg %p117
      %p232 = pneg %p148
      %p233 = pneg %p145
      %s234 = smul.u32 2, %s20
      %p235 = scmp.lt.s32.totalorder %s19, 1
      %s236 = scalar_select %p235, %s19, 1
      %p237 = scmp.lt.s32.totalorder %s234, 1
      %s238 = scalar_select %p237, %s234, 1
      %s239 = smul.addr %s236, 2
      %s240 = sadd.s32 %s238, %s239
      %s241 = smul.addr %s240, 8
      %s242 = scalar_lea.vmem %s4, %s241
      %s243 = smul.u32 2, %s20
      %p244 = scmp.lt.s32.totalorder %s19, 1
      %s245 = scalar_select %p244, %s19, 1
      %p246 = scmp.lt.s32.totalorder %s243, 1
      %s247 = scalar_select %p246, %s243, 1
      %s248 = smul.addr %s245, 40
      %s249 = sadd.s32 %s247, %s248
      %s250 = smul.addr %s249, 8
      %s251 = scalar_lea.vmem %s0, %s250
      %s252 = smul.u32 2, %s20
      %s253 = smul.u32 2, %s20
      %p254 = scmp.lt.s32.totalorder %s19, 1
      %s255 = scalar_select %p254, %s19, 1
      %p256 = scmp.lt.s32.totalorder %s253, 1
      %s257 = scalar_select %p256, %s253, 1
      %s258 = smul.addr %s255, 10
      %s259 = sadd.s32 %s257, %s258
      %s260 = smul.addr %s259, 8
      %s261 = scalar_lea.vmem %s1, %s260
      %s262 = smul.u32 2, %s20
      %s263 = smul.u32 2, %s20
      %p264 = scmp.lt.s32.totalorder %s19, 1
      %s265 = scalar_select %p264, %s19, 1
      %p266 = scmp.lt.s32.totalorder %s263, 1
      %s267 = scalar_select %p266, %s263, 1
      %s268 = smul.addr %s265, 2
      %s269 = sadd.s32 %s267, %s268
      %s270 = smul.addr %s269, 8
      %s271 = scalar_lea.vmem %s4, %s270
      %s272 = smul.u32 2, %s20
      %v273 = vld [vmem:[%s261] sm:$0xff]
      %v274 = vld [vmem:[%s261 + $0x8] sm:$0xff]
      %v275 = vld [vmem:[%s261 + $0x10] sm:$0xff]
      %v276 = vld [vmem:[%s261 + $0x18] sm:$0xff]
      %v277 = vld [vmem:[%s261 + $0x20] sm:$0xff]
      %v278 = vld [vmem:[%s261 + $0x28] sm:$0xff]
      %v279 = vld [vmem:[%s261 + $0x30] sm:$0xff]
      %v280 = vld [vmem:[%s261 + $0x38] sm:$0xff]
      %v281 = vld [vmem:[%s261 + $0x40] sm:$0xff]
      %v282 = vld [vmem:[%s261 + $0x48] sm:$0xff]
      %v283 = vld [vmem:[%s251] sm:$0xff]
      %v284 = vld [vmem:[%s251 + $0x8] sm:$0xff]
      %v285 = vld [vmem:[%s251 + $0x10] sm:$0xff]
      %v286 = vld [vmem:[%s251 + $0x18] sm:$0xff]
      %v287 = vld [vmem:[%s251 + $0x20] sm:$0xff]
      %v288 = vld [vmem:[%s251 + $0x28] sm:$0xff]
      %v289 = vld [vmem:[%s251 + $0x30] sm:$0xff]
      %v290 = vld [vmem:[%s251 + $0x38] sm:$0xff]
      %v291 = vld [vmem:[%s251 + $0x40] sm:$0xff]
      %v292 = vld [vmem:[%s251 + $0x48] sm:$0xff]
      %v293 = vmul.f32 %v283, %v273
      %v294 = vmul.f32 %v284, %v274
      %v295 = vmul.f32 %v285, %v275
      %v296 = vmul.f32 %v286, %v276
      %v297 = vmul.f32 %v287, %v277
      %v298 = vmul.f32 %v288, %v278
      %v299 = vmul.f32 %v289, %v279
      %v300 = vmul.f32 %v290, %v280
      %v301 = vmul.f32 %v291, %v281
      %v302 = vmul.f32 %v292, %v282
      %303 = vst [vmem:[#allocation2] sm:$0xff] %v293
      %304 = vst [vmem:[#allocation2 + $0x8] sm:$0xff] %v294
      %305 = vst [vmem:[#allocation2 + $0x10] sm:$0xff] %v295
      %306 = vst [vmem:[#allocation2 + $0x18] sm:$0xff] %v296
      %307 = vst [vmem:[#allocation2 + $0x20] sm:$0xff] %v297
      %308 = vst [vmem:[#allocation2 + $0x28] sm:$0xff] %v298
      %309 = vst [vmem:[#allocation2 + $0x30] sm:$0xff] %v299
      %310 = vst [vmem:[#allocation2 + $0x38] sm:$0xff] %v300
      %311 = vst [vmem:[#allocation2 + $0x40] sm:$0xff] %v301
      %312 = vst [vmem:[#allocation2 + $0x48] sm:$0xff] %v302
      %s313 = scalar_lea.vmem %s251, 80
      %v314 = vld [vmem:[%s313] sm:$0xff]
      %v315 = vld [vmem:[%s313 + $0x8] sm:$0xff]
      %v316 = vld [vmem:[%s313 + $0x10] sm:$0xff]
      %v317 = vld [vmem:[%s313 + $0x18] sm:$0xff]
      %v318 = vld [vmem:[%s313 + $0x20] sm:$0xff]
      %v319 = vld [vmem:[%s313 + $0x28] sm:$0xff]
      %v320 = vld [vmem:[%s313 + $0x30] sm:$0xff]
      %v321 = vld [vmem:[%s313 + $0x38] sm:$0xff]
      %v322 = vld [vmem:[%s313 + $0x40] sm:$0xff]
      %v323 = vld [vmem:[%s313 + $0x48] sm:$0xff]
      %v324 = vmul.f32 %v314, %v273
      %v325 = vmul.f32 %v315, %v274
      %v326 = vmul.f32 %v316, %v275
      %v327 = vmul.f32 %v317, %v276
      %v328 = vmul.f32 %v318, %v277
      %v329 = vmul.f32 %v319, %v278
      %v330 = vmul.f32 %v320, %v279
      %v331 = vmul.f32 %v321, %v280
      %v332 = vmul.f32 %v322, %v281
      %v333 = vmul.f32 %v323, %v282
      %334 = vst [vmem:[#allocation2 + $0x50] sm:$0xff] %v324
      %335 = vst [vmem:[#allocation2 + $0x58] sm:$0xff] %v325
      %336 = vst [vmem:[#allocation2 + $0x60] sm:$0xff] %v326
      %337 = vst [vmem:[#allocation2 + $0x68] sm:$0xff] %v327
      %338 = vst [vmem:[#allocation2 + $0x70] sm:$0xff] %v328
      %339 = vst [vmem:[#allocation2 + $0x78] sm:$0xff] %v329
      %340 = vst [vmem:[#allocation2 + $0x80] sm:$0xff] %v330
      %341 = vst [vmem:[#allocation2 + $0x88] sm:$0xff] %v331
      %342 = vst [vmem:[#allocation2 + $0x90] sm:$0xff] %v332
      %343 = vst [vmem:[#allocation2 + $0x98] sm:$0xff] %v333
      %s344 = scalar_lea.vmem %s251, 160
      %v345 = vld [vmem:[%s344] sm:$0xff]
      %v346 = vld [vmem:[%s344 + $0x8] sm:$0xff]
      %v347 = vld [vmem:[%s344 + $0x10] sm:$0xff]
      %v348 = vld [vmem:[%s344 + $0x18] sm:$0xff]
      %v349 = vld [vmem:[%s344 + $0x20] sm:$0xff]
      %v350 = vld [vmem:[%s344 + $0x28] sm:$0xff]
      %v351 = vld [vmem:[%s344 + $0x30] sm:$0xff]
      %v352 = vld [vmem:[%s344 + $0x38] sm:$0xff]
      %v353 = vld [vmem:[%s344 + $0x40] sm:$0xff]
      %v354 = vld [vmem:[%s344 + $0x48] sm:$0xff]
      %v355 = vmul.f32 %v345, %v273
      %v356 = vmul.f32 %v346, %v274
      %v357 = vmul.f32 %v347, %v275
      %v358 = vmul.f32 %v348, %v276
      %v359 = vmul.f32 %v349, %v277
      %v360 = vmul.f32 %v350, %v278
      %v361 = vmul.f32 %v351, %v279
      %v362 = vmul.f32 %v352, %v280
      %v363 = vmul.f32 %v353, %v281
      %v364 = vmul.f32 %v354, %v282
      %365 = vst [vmem:[#allocation2 + $0xa0] sm:$0xff] %v355
      %366 = vst [vmem:[#allocation2 + $0xa8] sm:$0xff] %v356
      %367 = vst [vmem:[#allocation2 + $0xb0] sm:$0xff] %v357
      %368 = vst [vmem:[#allocation2 + $0xb8] sm:$0xff] %v358
      %369 = vst [vmem:[#allocation2 + $0xc0] sm:$0xff] %v359
      %370 = vst [vmem:[#allocation2 + $0xc8] sm:$0xff] %v360
      %371 = vst [vmem:[#allocation2 + $0xd0] sm:$0xff] %v361
      %372 = vst [vmem:[#allocation2 + $0xd8] sm:$0xff] %v362
      %373 = vst [vmem:[#allocation2 + $0xe0] sm:$0xff] %v363
      %374 = vst [vmem:[#allocation2 + $0xe8] sm:$0xff] %v364
      %s375 = scalar_lea.vmem %s251, 240
      %v376 = vld [vmem:[%s375] sm:$0xff]
      %v377 = vld [vmem:[%s375 + $0x8] sm:$0xff]
      %v378 = vld [vmem:[%s375 + $0x10] sm:$0xff]
      %v379 = vld [vmem:[%s375 + $0x18] sm:$0xff]
      %v380 = vld [vmem:[%s375 + $0x20] sm:$0xff]
      %v381 = vld [vmem:[%s375 + $0x28] sm:$0xff]
      %v382 = vld [vmem:[%s375 + $0x30] sm:$0xff]
      %v383 = vld [vmem:[%s375 + $0x38] sm:$0xff]
      %v384 = vld [vmem:[%s375 + $0x40] sm:$0xff]
      %v385 = vld [vmem:[%s375 + $0x48] sm:$0xff]
      %v386 = vmul.f32 %v376, %v273
      %v387 = vmul.f32 %v377, %v274
      %v388 = vmul.f32 %v378, %v275
      %v389 = vmul.f32 %v379, %v276
      %v390 = vmul.f32 %v380, %v277
      %v391 = vmul.f32 %v381, %v278
      %v392 = vmul.f32 %v382, %v279
      %v393 = vmul.f32 %v383, %v280
      %v394 = vmul.f32 %v384, %v281
      %v395 = vmul.f32 %v385, %v282
      %396 = vst [vmem:[#allocation2 + $0xf0] sm:$0xff] %v386
      %397 = vst [vmem:[#allocation2 + $0xf8] sm:$0xff] %v387
      %398 = vst [vmem:[#allocation2 + $0x100] sm:$0xff] %v388
      %399 = vst [vmem:[#allocation2 + $0x108] sm:$0xff] %v389
      %400 = vst [vmem:[#allocation2 + $0x110] sm:$0xff] %v390
      %401 = vst [vmem:[#allocation2 + $0x118] sm:$0xff] %v391
      %402 = vst [vmem:[#allocation2 + $0x120] sm:$0xff] %v392
      %403 = vst [vmem:[#allocation2 + $0x128] sm:$0xff] %v393
      %404 = vst [vmem:[#allocation2 + $0x130] sm:$0xff] %v394
      %405 = vst [vmem:[#allocation2 + $0x138] sm:$0xff] %v395
      %v406 = vld [vmem:[#allocation2] sm:$0xff]
      %v407 = vld [vmem:[#allocation2 + $0x8] sm:$0xff]
      %v408 = vld [vmem:[#allocation2 + $0x10] sm:$0xff]
      %v409 = vld [vmem:[#allocation2 + $0x18] sm:$0xff]
      %v410 = vld [vmem:[#allocation2 + $0x20] sm:$0xff]
      %v411 = vld [vmem:[#allocation2 + $0x28] sm:$0xff]
      %v412 = vld [vmem:[#allocation2 + $0x30] sm:$0xff]
      %v413 = vld [vmem:[#allocation2 + $0x38] sm:$0xff]
      %v414 = vld [vmem:[#allocation2 + $0x40] sm:$0xff]
      %v415 = vld [vmem:[#allocation2 + $0x48] sm:$0xff]
      %v416 = vld [vmem:[#allocation2 + $0x50] sm:$0xff]
      %v417 = vld [vmem:[#allocation2 + $0x58] sm:$0xff]
      %v418 = vld [vmem:[#allocation2 + $0x60] sm:$0xff]
      %v419 = vld [vmem:[#allocation2 + $0x68] sm:$0xff]
      %v420 = vld [vmem:[#allocation2 + $0x70] sm:$0xff]
      %v421 = vld [vmem:[#allocation2 + $0x78] sm:$0xff]
      %v422 = vld [vmem:[#allocation2 + $0x80] sm:$0xff]
      %v423 = vld [vmem:[#allocation2 + $0x88] sm:$0xff]
      %v424 = vld [vmem:[#allocation2 + $0x90] sm:$0xff]
      %v425 = vld [vmem:[#allocation2 + $0x98] sm:$0xff]
      %v426 = vld [vmem:[#allocation2 + $0xa0] sm:$0xff]
      %v427 = vld [vmem:[#allocation2 + $0xa8] sm:$0xff]
      %v428 = vld [vmem:[#allocation2 + $0xb0] sm:$0xff]
      %v429 = vld [vmem:[#allocation2 + $0xb8] sm:$0xff]
      %v430 = vld [vmem:[#allocation2 + $0xc0] sm:$0xff]
      %v431 = vld [vmem:[#allocation2 + $0xc8] sm:$0xff]
      %v432 = vld [vmem:[#allocation2 + $0xd0] sm:$0xff]
      %v433 = vld [vmem:[#allocation2 + $0xd8] sm:$0xff]
      %v434 = vld [vmem:[#allocation2 + $0xe0] sm:$0xff]
      %v435 = vld [vmem:[#allocation2 + $0xe8] sm:$0xff]
      %v436 = vld [vmem:[#allocation2 + $0xf0] sm:$0xff]
      %v437 = vld [vmem:[#allocation2 + $0xf8] sm:$0xff]
      %v438 = vld [vmem:[#allocation2 + $0x100] sm:$0xff]
      %v439 = vld [vmem:[#allocation2 + $0x108] sm:$0xff]
      %v440 = vld [vmem:[#allocation2 + $0x110] sm:$0xff]
      %v441 = vld [vmem:[#allocation2 + $0x118] sm:$0xff]
      %v442 = vld [vmem:[#allocation2 + $0x120] sm:$0xff]
      %v443 = vld [vmem:[#allocation2 + $0x128] sm:$0xff]
      %v444 = vld [vmem:[#allocation2 + $0x130] sm:$0xff]
      %v445 = vld [vmem:[#allocation2 + $0x138] sm:$0xff]
      %v446 = vld [vmem:[%s2] sm:$0xff]
      %v447 = vld [vmem:[%s2 + $0x8] sm:$0xff]
      %v448 = vld [vmem:[%s3] sm:$0xff]
      %450 = vset.pattern.permute.xlu0 0
      %451 = vperm.xlu0 %450, %v448
      %v452 = vpop.permute.xlu0 %451
      %vm454 = vcmask 261120
      %v456 = vsel %vm454, %v447, 0
      %458 = vmatprep.subr.mxu0 %v407
      %459 = vmatpush1.msra.mxu0 %v406
      %460 = vmatprep.subr.mxu0 %v409
      %461 = vmatpush1.msra.mxu0 %v408
      %462 = vmatprep.subr.mxu0 %v411
      %463 = vmatpush1.msra.mxu0 %v410
      %464 = vmatprep.subr.mxu0 %v413
      %465 = vmatpush1.msra.mxu0 %v412
      %466 = vmatprep.subr.mxu0 %v415
      %467 = vmatpush1.msra.mxu0 %v414
      %468 = vmatprep.subr.mxu0 %v417
      %469 = vmatpush1.msra.mxu0 %v416
      %470 = vmatprep.subr.mxu0 %v419
      %471 = vmatpush1.msra.mxu0 %v418
      %472 = vmatprep.subr.mxu0 %v421
      %473 = vmatpush1.msra.mxu0 %v420
      %474 = vmatprep.subr.mxu0 %v423
      %475 = vmatpush1.msra.mxu0 %v422
      %476 = vmatprep.subr.mxu0 %v425
      %477 = vmatpush1.msra.mxu0 %v424
      %478 = vmatprep.subr.mxu0 %v427
      %479 = vmatpush1.msra.mxu0 %v426
      %480 = vmatprep.subr.mxu0 %v429
      %481 = vmatpush1.msra.mxu0 %v428
      %482 = vmatprep.subr.mxu0 %v431
      %483 = vmatpush1.msra.mxu0 %v430
      %484 = vmatprep.subr.mxu0 %v433
      %485 = vmatpush1.msra.mxu0 %v432
      %486 = vmatprep.subr.mxu0 %v435
      %487 = vmatpush1.msra.mxu0 %v434
      %488 = vmatprep.subr.mxu0 %v437
      %489 = vmatpush1.msra.mxu0 %v436
      %490 = vmatprep.subr.mxu0 %v439
      %491 = vmatpush1.msra.mxu0 %v438
      %492 = vmatprep.subr.mxu0 %v441
      %493 = vmatpush1.msra.mxu0 %v440
      %494 = vmatprep.subr.mxu0 %v443
      %495 = vmatpush1.msra.mxu0 %v442
      %496 = vmatprep.subr.mxu0 %v445
      %497 = vmatpush1.msra.mxu0 %v444
      %498 = vmatprep.subr.mxu0 0.0
      %499 = vmatpush1.msra.mxu0 0.0
      %500 = vmatprep.subr.mxu0 0.0
      %501 = vmatpush1.msra.mxu0 0.0
      %502 = vmatprep.subr.mxu0 0.0
      %503 = vmatpush1.msra.mxu0 0.0
      %504 = vmatprep.subr.mxu0 0.0
      %505 = vmatpush1.msra.mxu0 0.0
      %506 = vmatprep.subr.mxu0 0.0
      %507 = vmatpush1.msra.mxu0 0.0
      %508 = vmatprep.subr.mxu0 0.0
      %509 = vmatpush1.msra.mxu0 0.0
      %510 = vmatprep.subr.mxu0 0.0
      %511 = vmatpush1.msra.mxu0 0.0
      %512 = vmatprep.subr.mxu0 0.0
      %513 = vmatpush1.msra.mxu0 0.0
      %514 = vmatprep.subr.mxu0 0.0
      %515 = vmatpush1.msra.mxu0 0.0
      %516 = vmatprep.subr.mxu0 0.0
      %517 = vmatpush1.msra.mxu0 0.0
      %518 = vmatprep.subr.mxu0 0.0
      %519 = vmatpush1.msra.mxu0 0.0
      %520 = vmatprep.subr.mxu0 0.0
      %521 = vmatpush1.msra.mxu0 0.0
      %522 = vmatprep.mubr.f32.mxu0 %v456
      %523 = vmatmul.mubr.f32.gmra.mrb[0].mxu0 %v446
      %v524 = vpop.f32.mrb[0].mxu0
      %v525 = vadd.f32 %v452, %v524
      %v526 = vpop.f32.mrb[0].mxu0
      %v527 = vadd.f32 %v452, %v526
      %528 = vdwg.mxu0
      %529 = vst [vmem:[%s271] sm:$0xff] %v525
      %530 = vst [vmem:[%s271 + $0x8] sm:$0xff] %v527
      %s531 = smul.u32 2, %s20
      %p532 = scmp.lt.s32.totalorder %s19, 1
      %s533 = scalar_select %p532, %s19, 1
      %p534 = scmp.lt.s32.totalorder %s531, 1
      %s535 = scalar_select %p534, %s531, 1
      %s536 = smul.addr %s533, 2
      %s537 = sadd.s32 %s535, %s536
      %s538 = smul.addr %s537, 8
      %s539 = scalar_lea.vmem %s4, %s538
      // Predicated region
      $region37: #{_lambda_.1} parent=35 // pred_check
        %p540 = pneg %p145
      $region38: #{_lambda_.1} parent=35 // pred_check_branch
        %542 = sbr.rel (%p540) target = $region40
      $region39: #{_lambda_.1} parent=35 // pred_region
        %s543 = smul.u32 2, %s20
      $region40: #{_lambda_.1} parent=35 // pred_fallthru
        _
    $region36: #{_lambda_.1} parent=5 // pred_fallthru
      _
    %p544 = scmp.le.s32.totalorder 2, %s10
    // Predicated region
    $region41: #{_lambda_.1} parent=5 // pred_check
      %p545 = pneg %p544
    $region42: #{_lambda_.1} parent=5 // pred_check_branch
      %547 = sbr.rel (%p545) target = $region44
    $region43: #{_lambda_.1} parent=5 // pred_region
      %s548 = ssub.s32 %s10, 2
      // Predicated region
      $region45: #{_lambda_.1} parent=43 // pred_check
        %p549 = pneg %p151
      $region46: #{_lambda_.1} parent=43 // pred_check_branch
        %551 = sbr.rel (%p549) target = $region48
      $region47: #{_lambda_.1} parent=43 // pred_region
        %s552 = smul.u32 2, %s22
        %p553 = scmp.lt.s32.totalorder %s21, 1
        %s554 = scalar_select %p553, %s21, 1
        %p555 = scmp.lt.s32.totalorder %s552, 1
        %s556 = scalar_select %p555, %s552, 1
        %s557 = smul.addr %s554, 2
        %s558 = sadd.s32 %s556, %s557
        %s559 = smul.addr %s558, 8
        %s560 = scalar_lea.vmem %s4, %s559
      $region48: #{_lambda_.1} parent=43 // pred_fallthru
        _
    $region44: #{_lambda_.1} parent=5 // pred_fallthru
      _
  $region6: #{_lambda_.1} parent=0 // loop_footer
    %s14 = sadd.s32 1, %s10
  $region7: #{_lambda_.1} parent=0 // loop_footer_branch
    %9 = sbr.rel target = $region3
  $region8: #{_lambda_.1} parent=0 // loop_exit
    _

</llo_original>
